<compile_context>
chip_gen: v5e
topology: v5e:2x2
jax: 0.10.0
libtpu: 0.0.40
codegen_flags: <defaults>
</compile_context>

<pallas_src>
import jax
import jax.numpy as jnp
from jax.experimental import pallas as pl
from jax.experimental.pallas import tpu as pltpu

INPUT_SIZE = 25
INPUT_PAD = 32          # pad K=25 -> 32 (sublane-friendly, avoids ragged K)
HIDDEN1 = 128
LSTM_H = 64
HIDDEN2 = 64
OUTPUT_SIZE = 4

_BLOCK_B = 256          # batch-tile rows per grid step (multiple of 8)


def agent_nn_kernel(
    x_ref,        # (TB, INPUT_PAD)        bf16
    hc0_ref,      # (TB, 2*LSTM_H)         f32   [h0 | c0]
    w1_ref,       # (INPUT_PAD, HIDDEN1)   bf16
    b1_ref,       # (1, HIDDEN1)           f32
    w_ih_ref,     # (HIDDEN1, 4*LSTM_H)    bf16  gate cols [i, f, o, g]
    w_hh_ref,     # (LSTM_H, 4*LSTM_H)     bf16  gate cols [i, f, o, g]
    b_lstm_ref,   # (1, 4*LSTM_H)          f32   = b_ih + b_hh, permuted
    w2_ref,       # (LSTM_H, HIDDEN2)      bf16
    b2_ref,       # (1, HIDDEN2)           f32
    w3_ref,       # (HIDDEN2, OUTPUT_SIZE) bf16
    b3_ref,       # (1, OUTPUT_SIZE)       f32
    out_ref,      # (TB, OUTPUT_SIZE)      f32
    hc1_ref,      # (TB, 2*LSTM_H)         f32   [h1 | c1] (lane-dense store)
):
    x = x_ref[...]                       # bf16
    h0 = hc0_ref[:, :LSTM_H]             # f32
    c0 = hc0_ref[:, LSTM_H:]

    # fc1 + ReLU (bf16 MXU, f32 accumulate)
    a1 = jnp.dot(x, w1_ref[...], preferred_element_type=jnp.float32) + b1_ref[...]
    a1 = jnp.maximum(a1, 0.0)

    # Single-timestep LSTM cell; gate columns pre-permuted to [i, f, o, g]
    gates = (
        jnp.dot(a1.astype(jnp.bfloat16), w_ih_ref[...],
                preferred_element_type=jnp.float32)
        + jnp.dot(h0.astype(jnp.bfloat16), w_hh_ref[...],
                  preferred_element_type=jnp.float32)
        + b_lstm_ref[...]
    )
    sig = jax.nn.sigmoid(gates[:, : 3 * LSTM_H])   # i, f, o in one call
    g_g = jnp.tanh(gates[:, 3 * LSTM_H:])          # g in one call
    i_g = sig[:, 0 * LSTM_H:1 * LSTM_H]
    f_g = sig[:, 1 * LSTM_H:2 * LSTM_H]
    o_g = sig[:, 2 * LSTM_H:3 * LSTM_H]

    c1 = f_g * c0 + i_g * g_g
    h1 = o_g * jnp.tanh(c1)

    # one 128-lane (full-vreg-width) unmasked store for the recurrent state
    hc1_ref[...] = jnp.concatenate([h1, c1], axis=-1)

    # fc2 + ReLU
    a2 = jnp.dot(h1.astype(jnp.bfloat16), w2_ref[...],
                 preferred_element_type=jnp.float32) + b2_ref[...]
    a2 = jnp.maximum(a2, 0.0)

    # fc3
    out_ref[...] = jnp.dot(a2.astype(jnp.bfloat16), w3_ref[...],
                           preferred_element_type=jnp.float32) + b3_ref[...]


def make_params(key):
    """Deterministic synthetic f32 parameters, PyTorch gate order [i, f, g, o],
    stored transposed to (in, out) for in-kernel x @ W."""
    ks = jax.random.split(key, 10)
    scale = 0.1
    return {
        "w1": jax.random.normal(ks[0], (INPUT_SIZE, HIDDEN1), jnp.float32) * scale,
        "b1": jax.random.normal(ks[1], (1, HIDDEN1), jnp.float32) * scale,
        "w_ih": jax.random.normal(ks[2], (HIDDEN1, 4 * LSTM_H), jnp.float32) * scale,
        "w_hh": jax.random.normal(ks[3], (LSTM_H, 4 * LSTM_H), jnp.float32) * scale,
        "b_ih": jax.random.normal(ks[4], (1, 4 * LSTM_H), jnp.float32) * scale,
        "b_hh": jax.random.normal(ks[5], (1, 4 * LSTM_H), jnp.float32) * scale,
        "w2": jax.random.normal(ks[6], (LSTM_H, HIDDEN2), jnp.float32) * scale,
        "b2": jax.random.normal(ks[7], (1, HIDDEN2), jnp.float32) * scale,
        "w3": jax.random.normal(ks[8], (HIDDEN2, OUTPUT_SIZE), jnp.float32) * scale,
        "b3": jax.random.normal(ks[9], (1, OUTPUT_SIZE), jnp.float32) * scale,
    }


def _permute_gates(w):
    """Reorder gate columns [i, f, g, o] -> [i, f, o, g] along the last axis."""
    h = LSTM_H
    return jnp.concatenate(
        [w[..., 0 * h:1 * h], w[..., 1 * h:2 * h],
         w[..., 3 * h:4 * h], w[..., 2 * h:3 * h]], axis=-1)


def prepare_packed_params(params):
    """One-time parameter prep: pad K, permute gates, fuse LSTM biases,
    cast matmul weights to bf16 (biases stay f32)."""
    w1_p = jnp.zeros((INPUT_PAD, HIDDEN1), jnp.float32).at[:INPUT_SIZE].set(params["w1"])
    b_lstm = _permute_gates(params["b_ih"] + params["b_hh"])
    return {
        "w1": w1_p.astype(jnp.bfloat16),
        "b1": params["b1"],
        "w_ih": _permute_gates(params["w_ih"]).astype(jnp.bfloat16),
        "w_hh": _permute_gates(params["w_hh"]).astype(jnp.bfloat16),
        "b_lstm": b_lstm,
        "w2": params["w2"].astype(jnp.bfloat16),
        "b2": params["b2"],
        "w3": params["w3"].astype(jnp.bfloat16),
        "b3": params["b3"],
    }


@jax.jit
def agent_nn_forward(x, hidden, packed):
    """x: (B, 25) f32; hidden: (h0, c0) each (1, B, 64) f32.
    Returns (out (B, 4), (h1, c1)) matching the PyTorch module."""
    h0, c0 = hidden
    B = x.shape[0]
    h0_2d = h0.reshape(B, LSTM_H)
    c0_2d = c0.reshape(B, LSTM_H)

    # batch tiling: TB rows per grid step, batch padded up to a multiple of TB
    tb = min(_BLOCK_B, 8 * pl.cdiv(B, 8))
    n_tiles = pl.cdiv(B, tb)
    pb = n_tiles * tb

    x_p = jnp.pad(x.astype(jnp.bfloat16),
                  ((0, pb - B), (0, INPUT_PAD - INPUT_SIZE)))
    hc0 = jnp.pad(jnp.concatenate([h0_2d, c0_2d], axis=-1), ((0, pb - B), (0, 0)))

    def batch_spec(f):
        return pl.BlockSpec((tb, f), lambda i: (i, 0))

    def weight_spec(shape):
        return pl.BlockSpec(shape, lambda i: (0, 0))   # VMEM-resident across tiles

    out_p, hc1 = pl.pallas_call(
        agent_nn_kernel,
        grid=(n_tiles,),
        in_specs=[
            batch_spec(INPUT_PAD),                     # x
            batch_spec(2 * LSTM_H),                    # [h0 | c0]
            weight_spec((INPUT_PAD, HIDDEN1)),         # w1
            weight_spec((1, HIDDEN1)),                 # b1
            weight_spec((HIDDEN1, 4 * LSTM_H)),        # w_ih
            weight_spec((LSTM_H, 4 * LSTM_H)),         # w_hh
            weight_spec((1, 4 * LSTM_H)),              # b_lstm
            weight_spec((LSTM_H, HIDDEN2)),            # w2
            weight_spec((1, HIDDEN2)),                 # b2
            weight_spec((HIDDEN2, OUTPUT_SIZE)),       # w3
            weight_spec((1, OUTPUT_SIZE)),             # b3
        ],
        out_specs=(
            batch_spec(OUTPUT_SIZE),                   # out
            batch_spec(2 * LSTM_H),                    # [h1 | c1]
        ),
        out_shape=(
            jax.ShapeDtypeStruct((pb, OUTPUT_SIZE), jnp.float32),
            jax.ShapeDtypeStruct((pb, 2 * LSTM_H), jnp.float32),
        ),
        input_output_aliases={1: 1},                   # hc0 updated in place -> hc1
        compiler_params=pltpu.CompilerParams(
            dimension_semantics=("parallel",)),        # v7x: shard tiles over 2 TCs
    )(
        x_p, hc0,
        packed["w1"], packed["b1"],
        packed["w_ih"], packed["w_hh"], packed["b_lstm"],
        packed["w2"], packed["b2"],
        packed["w3"], packed["b3"],
    )

    out = out_p[:B]
    h1 = hc1[:B, :LSTM_H][None, :, :]
    c1 = hc1[:B, LSTM_H:][None, :, :]
    return out, (h1, c1)


def reference_forward(x, hidden, params):
    """Pure-JAX f32 reference of the PyTorch forward (gate order [i, f, g, o])."""
    h0, c0 = hidden
    B = x.shape[0]
    h0 = h0.reshape(B, LSTM_H)
    c0 = c0.reshape(B, LSTM_H)
    a1 = jnp.maximum(x @ params["w1"] + params["b1"], 0.0)
    gates = a1 @ params["w_ih"] + h0 @ params["w_hh"] + params["b_ih"] + params["b_hh"]
    i_g = jax.nn.sigmoid(gates[:, 0 * LSTM_H:1 * LSTM_H])
    f_g = jax.nn.sigmoid(gates[:, 1 * LSTM_H:2 * LSTM_H])
    g_g = jnp.tanh(gates[:, 2 * LSTM_H:3 * LSTM_H])
    o_g = jax.nn.sigmoid(gates[:, 3 * LSTM_H:4 * LSTM_H])
    c1 = f_g * c0 + i_g * g_g
    h1 = o_g * jnp.tanh(c1)
    a2 = jnp.maximum(h1 @ params["w2"] + params["b2"], 0.0)
    out = a2 @ params["w3"] + params["b3"]
    return out, (h1[None], c1[None])


if __name__ == "__main__":
    B = 2
    key = jax.random.PRNGKey(0)
    kx, kh, kc = jax.random.split(key, 3)
    x = jax.random.normal(kx, (B, INPUT_SIZE), jnp.float32)
    h0 = jax.random.normal(kh, (1, B, LSTM_H), jnp.float32)
    c0 = jax.random.normal(kc, (1, B, LSTM_H), jnp.float32)

    params = make_params(jax.random.PRNGKey(42))
    packed = prepare_packed_params(params)   # one-time prep (pad/permute/bias-fuse/bf16)

    out, (h1, c1) = agent_nn_forward(x, (h0, c0), packed)
    jax.block_until_ready((out, h1, c1))

    # sanity check against pure-JAX f32 reference (tolerance loosened for bf16 matmuls)
    ref_out, (ref_h1, ref_c1) = reference_forward(x, (h0, c0), params)
    assert out.shape == (B, OUTPUT_SIZE)
    assert h1.shape == (1, B, LSTM_H) and c1.shape == (1, B, LSTM_H)
    assert jnp.allclose(out, ref_out, atol=5e-2, rtol=5e-2)
    assert jnp.allclose(h1, ref_h1, atol=5e-2, rtol=5e-2)
    assert jnp.allclose(c1, ref_c1, atol=5e-2, rtol=5e-2)

    print("KERNEL_OK")
</pallas_src>

<mosaic_0001>
module attributes {stable_mosaic.version = 11 : i64} {
  func.func @agent_nn_kernel(%arg0: i32, %arg1: memref<8x32xbf16, #tpu.memory_space<vmem>>, %arg2: memref<8x128xf32, #tpu.memory_space<vmem>>, %arg3: memref<32x128xbf16, #tpu.memory_space<vmem>>, %arg4: memref<1x128xf32, #tpu.memory_space<vmem>>, %arg5: memref<128x256xbf16, #tpu.memory_space<vmem>>, %arg6: memref<64x256xbf16, #tpu.memory_space<vmem>>, %arg7: memref<1x256xf32, #tpu.memory_space<vmem>>, %arg8: memref<64x64xbf16, #tpu.memory_space<vmem>>, %arg9: memref<1x64xf32, #tpu.memory_space<vmem>>, %arg10: memref<64x4xbf16, #tpu.memory_space<vmem>>, %arg11: memref<1x4xf32, #tpu.memory_space<vmem>>, %arg12: memref<8x4xf32, #tpu.memory_space<vmem>>, %arg13: memref<8x128xf32, #tpu.memory_space<vmem>>) attributes {dimension_semantics = [#tpu.dimension_semantics<parallel>], iteration_bounds = array<i64: 1>, scalar_prefetch = 0 : i64, scratch_operands = 0 : i64, tpu.core_type = #tpu.core_type<tc>, window_params = [{transform_indices = @transform_0, window_bounds = array<i64: 8, 32>}, {transform_indices = @transform_1, window_bounds = array<i64: 8, 128>}, {pipeline_mode = #tpu.pipeline_mode<synchronous>, transform_indices = @transform_2, window_bounds = array<i64: 32, 128>}, {pipeline_mode = #tpu.pipeline_mode<synchronous>, transform_indices = @transform_3, window_bounds = array<i64: 1, 128>}, {pipeline_mode = #tpu.pipeline_mode<synchronous>, transform_indices = @transform_4, window_bounds = array<i64: 128, 256>}, {pipeline_mode = #tpu.pipeline_mode<synchronous>, transform_indices = @transform_5, window_bounds = array<i64: 64, 256>}, {pipeline_mode = #tpu.pipeline_mode<synchronous>, transform_indices = @transform_6, window_bounds = array<i64: 1, 256>}, {pipeline_mode = #tpu.pipeline_mode<synchronous>, transform_indices = @transform_7, window_bounds = array<i64: 64, 64>}, {pipeline_mode = #tpu.pipeline_mode<synchronous>, transform_indices = @transform_8, window_bounds = array<i64: 1, 64>}, {pipeline_mode = #tpu.pipeline_mode<synchronous>, transform_indices = @transform_9, window_bounds = array<i64: 64, 4>}, {pipeline_mode = #tpu.pipeline_mode<synchronous>, transform_indices = @transform_10, window_bounds = array<i64: 1, 4>}, {transform_indices = @transform_11, window_bounds = array<i64: 8, 4>}, {transform_indices = @transform_12, window_bounds = array<i64: 8, 128>}]} {
    %c0 = arith.constant 0 : index
    %c0_0 = arith.constant 0 : index
    %0 = vector.load %arg1[%c0, %c0_0] : memref<8x32xbf16, #tpu.memory_space<vmem>>, vector<8x32xbf16>
    %c0_1 = arith.constant 0 : index
    %c0_2 = arith.constant 0 : index
    %1 = vector.load %arg2[%c0_1, %c0_2] : memref<8x128xf32, #tpu.memory_space<vmem>>, vector<8x64xf32>
    %c0_3 = arith.constant 0 : index
    %c64 = arith.constant 64 : index
    %2 = vector.load %arg2[%c0_3, %c64] : memref<8x128xf32, #tpu.memory_space<vmem>>, vector<8x64xf32>
    %c0_4 = arith.constant 0 : index
    %c0_5 = arith.constant 0 : index
    %3 = vector.load %arg3[%c0_4, %c0_5] : memref<32x128xbf16, #tpu.memory_space<vmem>>, vector<32x128xbf16>
    %cst = arith.constant dense<0.000000e+00> : vector<8x128xf32>
    %4 = tpu.matmul %0, %3, %cst {dimension_numbers = #tpu.dot_dimension_numbers<[1], [0], [0], [1], [0, 0, 1, 1], [], []>} : vector<8x32xbf16>, vector<32x128xbf16>, vector<8x128xf32> -> vector<8x128xf32>
    %c0_6 = arith.constant 0 : index
    %c0_7 = arith.constant 0 : index
    %5 = vector.load %arg4[%c0_6, %c0_7] : memref<1x128xf32, #tpu.memory_space<vmem>>, vector<1x128xf32>
    %6 = vector.broadcast %5 : vector<1x128xf32> to vector<8x128xf32>
    %7 = arith.addf %4, %6 : vector<8x128xf32>
    %cst_8 = arith.constant 0.000000e+00 : f32
    %8 = vector.broadcast %cst_8 : f32 to vector<8x128xf32>
    %9 = arith.maximumf %7, %8 : vector<8x128xf32>
    %10 = arith.truncf %9 : vector<8x128xf32> to vector<8x128xbf16>
    %c0_9 = arith.constant 0 : index
    %c0_10 = arith.constant 0 : index
    %11 = vector.load %arg5[%c0_9, %c0_10] : memref<128x256xbf16, #tpu.memory_space<vmem>>, vector<128x256xbf16>
    %cst_11 = arith.constant dense<0.000000e+00> : vector<8x256xf32>
    %12 = tpu.matmul %10, %11, %cst_11 {dimension_numbers = #tpu.dot_dimension_numbers<[1], [0], [0], [1], [0, 0, 1, 1], [], []>} : vector<8x128xbf16>, vector<128x256xbf16>, vector<8x256xf32> -> vector<8x256xf32>
    %13 = arith.truncf %1 : vector<8x64xf32> to vector<8x64xbf16>
    %c0_12 = arith.constant 0 : index
    %c0_13 = arith.constant 0 : index
    %14 = vector.load %arg6[%c0_12, %c0_13] : memref<64x256xbf16, #tpu.memory_space<vmem>>, vector<64x256xbf16>
    %cst_14 = arith.constant dense<0.000000e+00> : vector<8x256xf32>
    %15 = tpu.matmul %13, %14, %cst_14 {dimension_numbers = #tpu.dot_dimension_numbers<[1], [0], [0], [1], [0, 0, 1, 1], [], []>} : vector<8x64xbf16>, vector<64x256xbf16>, vector<8x256xf32> -> vector<8x256xf32>
    %16 = arith.addf %12, %15 : vector<8x256xf32>
    %c0_15 = arith.constant 0 : index
    %c0_16 = arith.constant 0 : index
    %17 = vector.load %arg7[%c0_15, %c0_16] : memref<1x256xf32, #tpu.memory_space<vmem>>, vector<1x256xf32>
    %18 = vector.broadcast %17 : vector<1x256xf32> to vector<8x256xf32>
    %19 = arith.addf %16, %18 : vector<8x256xf32>
    %20 = vector.extract_strided_slice %19 {offsets = [0, 0], sizes = [8, 192], strides = [1, 1]} : vector<8x256xf32> to vector<8x192xf32>
    %21 = arith.negf %20 : vector<8x192xf32>
    %22 = math.exp %21 : vector<8x192xf32>
    %cst_17 = arith.constant 1.000000e+00 : f32
    %23 = vector.broadcast %cst_17 : f32 to vector<8x192xf32>
    %24 = arith.addf %23, %22 : vector<8x192xf32>
    %25 = arith.divf %23, %24 : vector<8x192xf32>
    %26 = vector.extract_strided_slice %19 {offsets = [0, 192], sizes = [8, 64], strides = [1, 1]} : vector<8x256xf32> to vector<8x64xf32>
    %27 = math.tanh %26 : vector<8x64xf32>
    %28 = vector.extract_strided_slice %25 {offsets = [0, 0], sizes = [8, 64], strides = [1, 1]} : vector<8x192xf32> to vector<8x64xf32>
    %29 = vector.extract_strided_slice %25 {offsets = [0, 64], sizes = [8, 64], strides = [1, 1]} : vector<8x192xf32> to vector<8x64xf32>
    %30 = vector.extract_strided_slice %25 {offsets = [0, 128], sizes = [8, 64], strides = [1, 1]} : vector<8x192xf32> to vector<8x64xf32>
    %31 = arith.mulf %29, %2 : vector<8x64xf32>
    %32 = arith.mulf %28, %27 : vector<8x64xf32>
    %33 = arith.addf %31, %32 : vector<8x64xf32>
    %34 = math.tanh %33 : vector<8x64xf32>
    %35 = arith.mulf %30, %34 : vector<8x64xf32>
    %36 = tpu.concatenate %35, %33 in 1 : vector<8x64xf32>, vector<8x64xf32> -> vector<8x128xf32>
    %c0_18 = arith.constant 0 : index
    %c0_19 = arith.constant 0 : index
    %37 = vector.load %arg13[%c0_18, %c0_19] : memref<8x128xf32, #tpu.memory_space<vmem>>, vector<8x128xf32>
    tpu.vector_store %arg13[%c0_18, %c0_19], %36 {strides = array<i32>} : memref<8x128xf32, #tpu.memory_space<vmem>>, vector<8x128xf32>,
    %38 = arith.truncf %35 : vector<8x64xf32> to vector<8x64xbf16>
    %c0_20 = arith.constant 0 : index
    %c0_21 = arith.constant 0 : index
    %39 = vector.load %arg8[%c0_20, %c0_21] : memref<64x64xbf16, #tpu.memory_space<vmem>>, vector<64x64xbf16>
    %cst_22 = arith.constant dense<0.000000e+00> : vector<8x64xf32>
    %40 = tpu.matmul %38, %39, %cst_22 {dimension_numbers = #tpu.dot_dimension_numbers<[1], [0], [0], [1], [0, 0, 1, 1], [], []>} : vector<8x64xbf16>, vector<64x64xbf16>, vector<8x64xf32> -> vector<8x64xf32>
    %c0_23 = arith.constant 0 : index
    %c0_24 = arith.constant 0 : index
    %41 = vector.load %arg9[%c0_23, %c0_24] : memref<1x64xf32, #tpu.memory_space<vmem>>, vector<1x64xf32>
    %42 = vector.broadcast %41 : vector<1x64xf32> to vector<8x64xf32>
    %43 = arith.addf %40, %42 : vector<8x64xf32>
    %cst_25 = arith.constant 0.000000e+00 : f32
    %44 = vector.broadcast %cst_25 : f32 to vector<8x64xf32>
    %45 = arith.maximumf %43, %44 : vector<8x64xf32>
    %46 = arith.truncf %45 : vector<8x64xf32> to vector<8x64xbf16>
    %c0_26 = arith.constant 0 : index
    %c0_27 = arith.constant 0 : index
    %47 = vector.load %arg10[%c0_26, %c0_27] : memref<64x4xbf16, #tpu.memory_space<vmem>>, vector<64x4xbf16>
    %cst_28 = arith.constant dense<0.000000e+00> : vector<8x4xf32>
    %48 = tpu.matmul %46, %47, %cst_28 {dimension_numbers = #tpu.dot_dimension_numbers<[1], [0], [0], [1], [0, 0, 1, 1], [], []>} : vector<8x64xbf16>, vector<64x4xbf16>, vector<8x4xf32> -> vector<8x4xf32>
    %c0_29 = arith.constant 0 : index
    %c0_30 = arith.constant 0 : index
    %49 = vector.load %arg11[%c0_29, %c0_30] : memref<1x4xf32, #tpu.memory_space<vmem>>, vector<1x4xf32>
    %50 = vector.broadcast %49 : vector<1x4xf32> to vector<8x4xf32>
    %51 = arith.addf %48, %50 : vector<8x4xf32>
    %c0_31 = arith.constant 0 : index
    %c0_32 = arith.constant 0 : index
    %52 = vector.load %arg12[%c0_31, %c0_32] : memref<8x4xf32, #tpu.memory_space<vmem>>, vector<8x4xf32>
    tpu.vector_store %arg12[%c0_31, %c0_32], %51 {strides = array<i32>} : memref<8x4xf32, #tpu.memory_space<vmem>>, vector<8x4xf32>,
    return
  }
  func.func @transform_0(%arg0: i32) -> (i32, i32) {
    %c0_i32 = arith.constant 0 : i32
    %c0_i32_0 = arith.constant 0 : i32
    return %arg0, %c0_i32 : i32, i32
  }
  func.func @transform_1(%arg0: i32) -> (i32, i32) {
    %c0_i32 = arith.constant 0 : i32
    %c0_i32_0 = arith.constant 0 : i32
    return %arg0, %c0_i32 : i32, i32
  }
  func.func @transform_2(%arg0: i32) -> (i32, i32) {
    %c0_i32 = arith.constant 0 : i32
    %c0_i32_0 = arith.constant 0 : i32
    %c0_i32_1 = arith.constant 0 : i32
    return %c0_i32, %c0_i32_0 : i32, i32
  }
  func.func @transform_3(%arg0: i32) -> (i32, i32) {
    %c0_i32 = arith.constant 0 : i32
    %c0_i32_0 = arith.constant 0 : i32
    %c0_i32_1 = arith.constant 0 : i32
    return %c0_i32, %c0_i32_0 : i32, i32
  }
  func.func @transform_4(%arg0: i32) -> (i32, i32) {
    %c0_i32 = arith.constant 0 : i32
    %c0_i32_0 = arith.constant 0 : i32
    %c0_i32_1 = arith.constant 0 : i32
    return %c0_i32, %c0_i32_0 : i32, i32
  }
  func.func @transform_5(%arg0: i32) -> (i32, i32) {
    %c0_i32 = arith.constant 0 : i32
    %c0_i32_0 = arith.constant 0 : i32
    %c0_i32_1 = arith.constant 0 : i32
    return %c0_i32, %c0_i32_0 : i32, i32
  }
  func.func @transform_6(%arg0: i32) -> (i32, i32) {
    %c0_i32 = arith.constant 0 : i32
    %c0_i32_0 = arith.constant 0 : i32
    %c0_i32_1 = arith.constant 0 : i32
    return %c0_i32, %c0_i32_0 : i32, i32
  }
  func.func @transform_7(%arg0: i32) -> (i32, i32) {
    %c0_i32 = arith.constant 0 : i32
    %c0_i32_0 = arith.constant 0 : i32
    %c0_i32_1 = arith.constant 0 : i32
    return %c0_i32, %c0_i32_0 : i32, i32
  }
  func.func @transform_8(%arg0: i32) -> (i32, i32) {
    %c0_i32 = arith.constant 0 : i32
    %c0_i32_0 = arith.constant 0 : i32
    %c0_i32_1 = arith.constant 0 : i32
    return %c0_i32, %c0_i32_0 : i32, i32
  }
  func.func @transform_9(%arg0: i32) -> (i32, i32) {
    %c0_i32 = arith.constant 0 : i32
    %c0_i32_0 = arith.constant 0 : i32
    %c0_i32_1 = arith.constant 0 : i32
    return %c0_i32, %c0_i32_0 : i32, i32
  }
  func.func @transform_10(%arg0: i32) -> (i32, i32) {
    %c0_i32 = arith.constant 0 : i32
    %c0_i32_0 = arith.constant 0 : i32
    %c0_i32_1 = arith.constant 0 : i32
    return %c0_i32, %c0_i32_0 : i32, i32
  }
  func.func @transform_11(%arg0: i32) -> (i32, i32) {
    %c0_i32 = arith.constant 0 : i32
    %c0_i32_0 = arith.constant 0 : i32
    return %arg0, %c0_i32 : i32, i32
  }
  func.func @transform_12(%arg0: i32) -> (i32, i32) {
    %c0_i32 = arith.constant 0 : i32
    %c0_i32_0 = arith.constant 0 : i32
    return %arg0, %c0_i32 : i32, i32
  }
}

</mosaic_0001>

<llo_original>
// kernel: agent_nn_forward.1
$region0: #{agent_nn_forward.1}
  #allocation0 [shape = 'u32[]', space=smem, size = 0x4, offset = 0x4, fixed_abs, tag = 'smem constant byte address 0x4 - core index']
  #allocation1 [shape = 'u32[72,128]{1,0:T(1,128)}', space=vmem, size = 0x9000, scoped, tag = 'internal scratch']
  %s0 = inlined_call_operand.vmem [shape: bf16[8,32], index: 0, kind: input, shape index: {}]
  %s1 = inlined_call_operand.vmem [shape: f32[8,128], index: 1, kind: input, shape index: {}, may-alias: {1,12}]
  %s2 = inlined_call_operand.hbm [shape: bf16[32,128], index: 2, kind: input, shape index: {}]
  %s3 = inlined_call_operand.vmem [shape: f32[1,128], index: 3, kind: input, shape index: {}]
  %s4 = inlined_call_operand.hbm [shape: bf16[128,256], index: 4, kind: input, shape index: {}]
  %s5 = inlined_call_operand.hbm [shape: bf16[64,256], index: 5, kind: input, shape index: {}]
  %s6 = inlined_call_operand.vmem [shape: f32[1,256], index: 6, kind: input, shape index: {}]
  %s7 = inlined_call_operand.vmem [shape: bf16[64,64], index: 7, kind: input, shape index: {}]
  %s8 = inlined_call_operand.vmem [shape: f32[1,64], index: 8, kind: input, shape index: {}]
  %s9 = inlined_call_operand.vmem [shape: bf16[64,4], index: 9, kind: input, shape index: {}]
  %s10 = inlined_call_operand.vmem [shape: f32[1,4], index: 10, kind: input, shape index: {}]
  %s11 = inlined_call_operand.vmem [shape: f32[8,4], index: 11, kind: output, shape index: {0}]
  %s12 = inlined_call_operand.vmem [shape: f32[8,128], index: 12, kind: output, shape index: {1}, may-alias: {1,12}]
  %13 = xla_tuple %s11, %s12
  %s14 = sld [smem:[#allocation0]]
  $region74: #{agent_nn_forward.1} parent=0
    _
  %s16 = ssub.s32 1, %s14
  %s17 = scalar_select 0, %s16, %s14
  $region1: #{agent_nn_forward.1} parent=0
    #allocation2 [shape = 'u8[8192]{0}', space=vmem, size = 0x2000, scoped, tag = 'input window, operand 2, single buffered']
    #allocation3 [shape = 's32[1]{0}', space=sflag, size = 0x4, scoped, tag = 'scoped memory for agent_nn_forward.1']
    #allocation4 [shape = 'u8[65536]{0}', space=vmem, size = 0x10000, scoped, tag = 'input window, operand 4, single buffered']
    #allocation5 [shape = 's32[1]{0}', space=sflag, size = 0x4, scoped, tag = 'scoped memory for agent_nn_forward.1']
    #allocation6 [shape = 'u8[32768]{0}', space=vmem, size = 0x8000, scoped, tag = 'input window, operand 5, single buffered']
    %18 = vsyncpa [#allocation3], 0
    %19 = vsyncpa [#allocation5], 0
    // Predicated region
    $region2: #{agent_nn_forward.1} parent=1 // pred_check
      _
    $region3: #{agent_nn_forward.1} parent=1 // pred_check_branch
      %21 = sbr.rel (0) target = $region5
    $region4: #{agent_nn_forward.1} parent=1 // pred_region
      _
    $region5: #{agent_nn_forward.1} parent=1 // pred_fallthru
      _
    // Predicated region
    $region6: #{agent_nn_forward.1} parent=1 // pred_check
      _
    $region7: #{agent_nn_forward.1} parent=1 // pred_check_branch
      %23 = sbr.rel (0) target = $region9
    $region8: #{agent_nn_forward.1} parent=1 // pred_region
      _
    $region9: #{agent_nn_forward.1} parent=1 // pred_fallthru
      _
    // Predicated region
    $region10: #{agent_nn_forward.1} parent=1 // pred_check
      _
    $region11: #{agent_nn_forward.1} parent=1 // pred_check_branch
      %25 = sbr.rel (0) target = $region13
    $region12: #{agent_nn_forward.1} parent=1 // pred_region
      %27 = vsyncadd [#allocation3], 0
      %s28 = sshll.u32 %s2, 4
      %s29 = int_to_ptr.hbm [resolvable:$true] %s28
      %s30 = sshll.u32 [#allocation2], 4
      %s31 = int_to_ptr.vmem [resolvable:$true] %s30
      %36 = dma.hbm_to_vmem [thread:$0]  %s29, 256, %s31, [#allocation3], 64, 64, 4
    $region13: #{agent_nn_forward.1} parent=1 // pred_fallthru
      _
    // Predicated region
    $region14: #{agent_nn_forward.1} parent=1 // pred_check
      _
    $region15: #{agent_nn_forward.1} parent=1 // pred_check_branch
      %38 = sbr.rel (0) target = $region17
    $region16: #{agent_nn_forward.1} parent=1 // pred_region
      _
    $region17: #{agent_nn_forward.1} parent=1 // pred_fallthru
      _
    // Predicated region
    $region18: #{agent_nn_forward.1} parent=1 // pred_check
      _
    $region19: #{agent_nn_forward.1} parent=1 // pred_check_branch
      %40 = sbr.rel (0) target = $region21
    $region20: #{agent_nn_forward.1} parent=1 // pred_region
      %42 = vsyncadd [#allocation5], 0
      %s43 = sshll.u32 %s4, 4
      %s44 = int_to_ptr.hbm [resolvable:$true] %s43
      %s45 = sshll.u32 [#allocation4], 4
      %s46 = int_to_ptr.vmem [resolvable:$true] %s45
      %51 = dma.hbm_to_vmem [thread:$0]  %s44, 2048, %s46, [#allocation5], 128, 128, 8
    $region21: #{agent_nn_forward.1} parent=1 // pred_fallthru
      _
    // Predicated region
    $region22: #{agent_nn_forward.1} parent=1 // pred_check
      _
    $region23: #{agent_nn_forward.1} parent=1 // pred_check_branch
      %53 = sbr.rel (0) target = $region25
    $region24: #{agent_nn_forward.1} parent=1 // pred_region
      %55 = vsyncadd [#allocation5], 0
      %s56 = sshll.u32 %s5, 4
      %s57 = int_to_ptr.hbm [resolvable:$true] %s56
      %s58 = sshll.u32 [#allocation6], 4
      %s59 = int_to_ptr.vmem [resolvable:$true] %s58
      %64 = dma.hbm_to_vmem [thread:$0]  %s57, 1024, %s59, [#allocation5], 128, 128, 8
    $region25: #{agent_nn_forward.1} parent=1 // pred_fallthru
      _
    // Predicated region
    $region26: #{agent_nn_forward.1} parent=1 // pred_check
      _
    $region27: #{agent_nn_forward.1} parent=1 // pred_check_branch
      %66 = sbr.rel (0) target = $region29
    $region28: #{agent_nn_forward.1} parent=1 // pred_region
      _
    $region29: #{agent_nn_forward.1} parent=1 // pred_fallthru
      _
    // Predicated region
    $region30: #{agent_nn_forward.1} parent=1 // pred_check
      _
    $region31: #{agent_nn_forward.1} parent=1 // pred_check_branch
      %68 = sbr.rel (0) target = $region33
    $region32: #{agent_nn_forward.1} parent=1 // pred_region
      _
    $region33: #{agent_nn_forward.1} parent=1 // pred_fallthru
      _
    // Predicated region
    $region34: #{agent_nn_forward.1} parent=1 // pred_check
      _
    $region35: #{agent_nn_forward.1} parent=1 // pred_check_branch
      %70 = sbr.rel (0) target = $region37
    $region36: #{agent_nn_forward.1} parent=1 // pred_region
      _
    $region37: #{agent_nn_forward.1} parent=1 // pred_fallthru
      _
    // Predicated region
    $region38: #{agent_nn_forward.1} parent=1 // pred_check
      _
    $region39: #{agent_nn_forward.1} parent=1 // pred_check_branch
      %72 = sbr.rel (0) target = $region41
    $region40: #{agent_nn_forward.1} parent=1 // pred_region
      _
    $region41: #{agent_nn_forward.1} parent=1 // pred_fallthru
      _
    // Predicated region
    $region42: #{agent_nn_forward.1} parent=1 // pred_check
      _
    $region43: #{agent_nn_forward.1} parent=1 // pred_check_branch
      %74 = sbr.rel (0) target = $region45
    $region44: #{agent_nn_forward.1} parent=1 // pred_region
      _
    $region45: #{agent_nn_forward.1} parent=1 // pred_fallthru
      _
    // Predicated region
    $region46: #{agent_nn_forward.1} parent=1 // pred_check
      _
    $region47: #{agent_nn_forward.1} parent=1 // pred_check_branch
      %76 = sbr.rel (0) target = $region49
    $region48: #{agent_nn_forward.1} parent=1 // pred_region
      %78 = dma.done [#allocation3], 256
    $region49: #{agent_nn_forward.1} parent=1 // pred_fallthru
      _
    // Predicated region
    $region50: #{agent_nn_forward.1} parent=1 // pred_check
      _
    $region51: #{agent_nn_forward.1} parent=1 // pred_check_branch
      %80 = sbr.rel (0) target = $region53
    $region52: #{agent_nn_forward.1} parent=1 // pred_region
      %82 = dma.done [#allocation5], 2048
    $region53: #{agent_nn_forward.1} parent=1 // pred_fallthru
      _
    // Predicated region
    $region54: #{agent_nn_forward.1} parent=1 // pred_check
      _
    $region55: #{agent_nn_forward.1} parent=1 // pred_check_branch
      %84 = sbr.rel (0) target = $region57
    $region56: #{agent_nn_forward.1} parent=1 // pred_region
      %86 = dma.done [#allocation5], 1024
    $region57: #{agent_nn_forward.1} parent=1 // pred_fallthru
      _
    %v88 = vld [vmem:[%s0] sm:$0xf]
    %v89 = vld [vmem:[%s1] sm:$0xff]
    %v90 = vld [vmem:[#allocation2] sm:$0xf]
    %v91 = vld [vmem:[#allocation2 + $0x4] sm:$0xf]
    %v92 = vld [vmem:[#allocation2 + $0x8] sm:$0xf]
    %v93 = vld [vmem:[#allocation2 + $0xc] sm:$0xf]
    %v94 = vld [vmem:[%s3] sm:$0x1]
    %v96 = vperm.slane %v94, 0
    %v102 = vunpack.c.l.b16 %v90
    %v103 = vunpack.c.l.b16 %v91
    %v104 = vunpack.c.l.b16 %v92
    %v105 = vunpack.c.l.b16 %v93
    %v106 = vpack.c.b16 %v103, %v102
    %v107 = vpack.c.b16 %v105, %v104
    %vm110 = vcmask 261120
    %v112 = vsel %vm110, %v88, 0
    %114 = vmatpush.bf16.msra.mxu0 0
    %115 = vmatpush.bf16.msra.mxu0 0
    %116 = vmatpush.bf16.msra.mxu0 0
    %117 = vmatpush.bf16.msra.mxu0 0
    %118 = vmatpush.bf16.msra.mxu0 0
    %119 = vmatpush.bf16.msra.mxu0 0
    %120 = vmatpush.bf16.msra.mxu0 %v107
    %121 = vmatpush.bf16.msra.mxu0 %v106
    %122 = vmatmul.bf16.gmra.mxu0 %v112
    %v123 = vpop.f32.mrf.mxu0
    %v124 = vadd.f32 %v96, %v123
    %v125 = vpop.f32.mrf.mxu0
    %126 = vdwg.mxu0
    %v127 = vmax.f32 %v124, 0.0
    %v128 = vpack.c.bf16 %v127, %v127
    %v129 = vld [vmem:[#allocation4] sm:$0xff]
    %v130 = vld [vmem:[#allocation4 + $0x8] sm:$0xff]
    %v131 = vld [vmem:[#allocation4 + $0x10] sm:$0xff]
    %v132 = vld [vmem:[#allocation4 + $0x18] sm:$0xff]
    %v133 = vld [vmem:[#allocation4 + $0x20] sm:$0xff]
    %v134 = vld [vmem:[#allocation4 + $0x28] sm:$0xff]
    %v135 = vld [vmem:[#allocation4 + $0x30] sm:$0xff]
    %v136 = vld [vmem:[#allocation4 + $0x38] sm:$0xff]
    %v137 = vld [vmem:[#allocation4 + $0x40] sm:$0xff]
    %v138 = vld [vmem:[#allocation4 + $0x48] sm:$0xff]
    %v139 = vld [vmem:[#allocation4 + $0x50] sm:$0xff]
    %v140 = vld [vmem:[#allocation4 + $0x58] sm:$0xff]
    %v141 = vld [vmem:[#allocation4 + $0x60] sm:$0xff]
    %v142 = vld [vmem:[#allocation4 + $0x68] sm:$0xff]
    %v143 = vld [vmem:[#allocation4 + $0x70] sm:$0xff]
    %v144 = vld [vmem:[#allocation4 + $0x78] sm:$0xff]
    %v145 = vpack.c.bf16 %v89, %v89
    %v146 = vld [vmem:[#allocation6] sm:$0xff]
    %v147 = vld [vmem:[#allocation6 + $0x8] sm:$0xff]
    %v148 = vld [vmem:[#allocation6 + $0x10] sm:$0xff]
    %v149 = vld [vmem:[#allocation6 + $0x18] sm:$0xff]
    %v150 = vld [vmem:[#allocation6 + $0x20] sm:$0xff]
    %v151 = vld [vmem:[#allocation6 + $0x28] sm:$0xff]
    %v152 = vld [vmem:[#allocation6 + $0x30] sm:$0xff]
    %v153 = vld [vmem:[#allocation6 + $0x38] sm:$0xff]
    %v162 = vunpack.c.l.b16 %v146
    %v163 = vunpack.c.h.b16 %v146
    %v164 = vunpack.c.l.b16 %v147
    %v165 = vunpack.c.h.b16 %v147
    %v166 = vunpack.c.l.b16 %v148
    %v167 = vunpack.c.h.b16 %v148
    %v168 = vunpack.c.l.b16 %v149
    %v169 = vunpack.c.h.b16 %v149
    %v170 = vunpack.c.l.b16 %v150
    %v171 = vunpack.c.h.b16 %v150
    %v172 = vunpack.c.l.b16 %v151
    %v173 = vunpack.c.h.b16 %v151
    %v174 = vunpack.c.l.b16 %v152
    %v175 = vunpack.c.h.b16 %v152
    %v176 = vunpack.c.l.b16 %v153
    %v177 = vunpack.c.h.b16 %v153
    %v178 = vpack.c.b16 %v164, %v162
    %v179 = vpack.c.b16 %v165, %v163
    %v180 = vpack.c.b16 %v168, %v166
    %v181 = vpack.c.b16 %v169, %v167
    %v182 = vpack.c.b16 %v172, %v170
    %v183 = vpack.c.b16 %v173, %v171
    %v184 = vpack.c.b16 %v176, %v174
    %v185 = vpack.c.b16 %v177, %v175
    %vm194 = vcmask 523264
    %v196 = vsel %vm194, %v145, 0
    %198 = vmatpush.bf16.msra.mxu0 0
    %199 = vmatpush.bf16.msra.mxu0 0
    %200 = vmatpush.bf16.msra.mxu0 0
    %201 = vmatpush.bf16.msra.mxu0 0
    %202 = vmatpush.bf16.msra.mxu0 %v184
    %203 = vmatpush.bf16.msra.mxu0 %v182
    %204 = vmatpush.bf16.msra.mxu0 %v180
    %205 = vmatpush.bf16.msra.mxu0 %v178
    %206 = vmatmul.bf16.gmra.mxu0 %v196
    %v207 = vpop.f32.mrf.mxu0
    %v208 = vadd.f32 0.0, %v207
    %v209 = vpop.f32.mrf.mxu0
    %210 = vdwg.mxu0
    %211 = vmatpush.bf16.msra.mxu0 0
    %212 = vmatpush.bf16.msra.mxu0 0
    %213 = vmatpush.bf16.msra.mxu0 0
    %214 = vmatpush.bf16.msra.mxu0 0
    %215 = vmatpush.bf16.msra.mxu0 %v185
    %216 = vmatpush.bf16.msra.mxu0 %v183
    %217 = vmatpush.bf16.msra.mxu0 %v181
    %218 = vmatpush.bf16.msra.mxu0 %v179
    %219 = vmatmul.bf16.gmra.mxu0 %v196
    %v220 = vpop.f32.mrf.mxu0
    %v221 = vadd.f32 0.0, %v220
    %v222 = vpop.f32.mrf.mxu0
    %223 = vdwg.mxu0
    %v240 = vunpack.c.l.b16 %v129
    %v241 = vunpack.c.h.b16 %v129
    %v242 = vunpack.c.l.b16 %v130
    %v243 = vunpack.c.h.b16 %v130
    %v244 = vunpack.c.l.b16 %v131
    %v245 = vunpack.c.h.b16 %v131
    %v246 = vunpack.c.l.b16 %v132
    %v247 = vunpack.c.h.b16 %v132
    %v248 = vunpack.c.l.b16 %v133
    %v249 = vunpack.c.h.b16 %v133
    %v250 = vunpack.c.l.b16 %v134
    %v251 = vunpack.c.h.b16 %v134
    %v252 = vunpack.c.l.b16 %v135
    %v253 = vunpack.c.h.b16 %v135
    %v254 = vunpack.c.l.b16 %v136
    %v255 = vunpack.c.h.b16 %v136
    %v256 = vunpack.c.l.b16 %v137
    %v257 = vunpack.c.h.b16 %v137
    %v258 = vunpack.c.l.b16 %v138
    %v259 = vunpack.c.h.b16 %v138
    %v260 = vunpack.c.l.b16 %v139
    %v261 = vunpack.c.h.b16 %v139
    %v262 = vunpack.c.l.b16 %v140
    %v263 = vunpack.c.h.b16 %v140
    %v264 = vunpack.c.l.b16 %v141
    %v265 = vunpack.c.h.b16 %v141
    %v266 = vunpack.c.l.b16 %v142
    %v267 = vunpack.c.h.b16 %v142
    %v268 = vunpack.c.l.b16 %v143
    %v269 = vunpack.c.h.b16 %v143
    %v270 = vunpack.c.l.b16 %v144
    %v271 = vunpack.c.h.b16 %v144
    %v272 = vpack.c.b16 %v242, %v240
    %v273 = vpack.c.b16 %v243, %v241
    %v274 = vpack.c.b16 %v246, %v244
    %v275 = vpack.c.b16 %v247, %v245
    %v276 = vpack.c.b16 %v250, %v248
    %v277 = vpack.c.b16 %v251, %v249
    %v278 = vpack.c.b16 %v254, %v252
    %v279 = vpack.c.b16 %v255, %v253
    %v280 = vpack.c.b16 %v258, %v256
    %v281 = vpack.c.b16 %v259, %v257
    %v282 = vpack.c.b16 %v262, %v260
    %v283 = vpack.c.b16 %v263, %v261
    %v284 = vpack.c.b16 %v266, %v264
    %v285 = vpack.c.b16 %v267, %v265
    %v286 = vpack.c.b16 %v270, %v268
    %v287 = vpack.c.b16 %v271, %v269
    %304 = vmatpush.bf16.msra.mxu0 %v286
    %305 = vmatpush.bf16.msra.mxu0 %v284
    %306 = vmatpush.bf16.msra.mxu0 %v282
    %307 = vmatpush.bf16.msra.mxu0 %v280
    %308 = vmatpush.bf16.msra.mxu0 %v278
    %309 = vmatpush.bf16.msra.mxu0 %v276
    %310 = vmatpush.bf16.msra.mxu0 %v274
    %311 = vmatpush.bf16.msra.mxu0 %v272
    %312 = vmatmul.bf16.gmra.mxu0 %v128
    %v313 = vpop.f32.mrf.mxu0
    %v314 = vadd.f32 %v208, %v313
    %v315 = vpop.f32.mrf.mxu0
    %316 = vdwg.mxu0
    %317 = vmatpush.bf16.msra.mxu0 %v287
    %318 = vmatpush.bf16.msra.mxu0 %v285
    %319 = vmatpush.bf16.msra.mxu0 %v283
    %320 = vmatpush.bf16.msra.mxu0 %v281
    %321 = vmatpush.bf16.msra.mxu0 %v279
    %322 = vmatpush.bf16.msra.mxu0 %v277
    %323 = vmatpush.bf16.msra.mxu0 %v275
    %324 = vmatpush.bf16.msra.mxu0 %v273
    %325 = vmatmul.bf16.gmra.mxu0 %v128
    %v326 = vpop.f32.mrf.mxu0
    %v327 = vadd.f32 %v221, %v326
    %v328 = vpop.f32.mrf.mxu0
    %329 = vdwg.mxu0
    %v330 = vld [vmem:[%s6] sm:$0x3]
    %v332 = vperm.slane %v330, 0
    %v333 = vperm.slane %v330, 1
    %v336 = vadd.f32 %v314, %v332
    %v337 = vadd.f32 %v327, %v333
    %v338 = vxor.u32 %v336, 2147483648
    %v339 = vxor.u32 %v337, 2147483648
    %v340 = vmul.f32 %v338, 1.442695
    %v341 = vpow.pop %v340
    %v342 = vmul.f32 %v339, 1.442695
    %v343 = vpow.pop %v342
    %v344 = vadd.f32 %v341, 1.0
    %v345 = vadd.f32 %v343, 1.0
    %v346 = vrcp.pop %v344
    %v347 = vmul.f32 %v344, %v346
    %v348 = vsub.f32 1.0, %v347
    %v349 = vmul.f32 %v346, %v348
    %v350 = vadd.f32 %v346, %v349
    %vm351 = vweird.f32 %v344
    %vm352 = vweird.f32 %v346
    %vm353 = vmor %vm351, %vm352
    %v354 = vsel %vm353, %v346, %v350
    %v355 = vand.u32 2147483647, %v344
    %vm356 = vcmp.eq.f32.partialorder %v355, 8.507059e+37
    %v357 = vand.u32 %v344, 2147483648
    %v358 = vor.u32 1.1754944e-38, %v357
    %v359 = vsel %vm356, %v358, %v354
    %v360 = vmul.f32 1.0, %v359
    %v361 = vrcp.pop %v345
    %v362 = vmul.f32 %v345, %v361
    %v363 = vsub.f32 1.0, %v362
    %v364 = vmul.f32 %v361, %v363
    %v365 = vadd.f32 %v361, %v364
    %vm366 = vweird.f32 %v345
    %vm367 = vweird.f32 %v361
    %vm368 = vmor %vm366, %vm367
    %v369 = vsel %vm368, %v361, %v365
    %v370 = vand.u32 2147483647, %v345
    %vm371 = vcmp.eq.f32.partialorder %v370, 8.507059e+37
    %v372 = vand.u32 %v345, 2147483648
    %v373 = vor.u32 1.1754944e-38, %v372
    %v374 = vsel %vm371, %v373, %v369
    %v375 = vmul.f32 1.0, %v374
    %v376 = vtanh.pop %v337
    %v377 = vmul.f32 %v360, %v89
    %379 = vrot.lane.b32.xlu0 %v376, 64
    %v380 = vpop.permute.xlu0 %379
    %v382 = vmul.f32 %v360, %v380
    %384 = vrot.lane.b32.xlu0 %v382, 64
    %v385 = vpop.permute.xlu0 %384
    %v387 = vadd.f32 %v377, %v385
    %v388 = vtanh.pop %v387
    %390 = vrot.lane.b32.xlu0 %v388, 64
    %v391 = vpop.permute.xlu0 %390
    %v393 = vmul.f32 %v375, %v391
    %v394 = vsel %vm194, %v393, %v387
    %395 = vst [vmem:[%s12] sm:$0xff] %v394
    %v396 = vpack.c.bf16 %v393, %v393
    %v397 = vld [vmem:[%s7] sm:$0xf]
    %v398 = vld [vmem:[%s7 + $0x4] sm:$0xf]
    %v399 = vld [vmem:[%s7 + $0x8] sm:$0xf]
    %v400 = vld [vmem:[%s7 + $0xc] sm:$0xf]
    %v401 = vld [vmem:[%s7 + $0x10] sm:$0xf]
    %v402 = vld [vmem:[%s7 + $0x14] sm:$0xf]
    %v403 = vld [vmem:[%s7 + $0x18] sm:$0xf]
    %v404 = vld [vmem:[%s7 + $0x1c] sm:$0xf]
    %v405 = vld [vmem:[%s8] sm:$0x1]
    %v407 = vperm.slane %v405, 0
    %v417 = vunpack.c.l.b16 %v397
    %v418 = vunpack.c.l.b16 %v398
    %v419 = vunpack.c.l.b16 %v399
    %v420 = vunpack.c.l.b16 %v400
    %v421 = vunpack.c.l.b16 %v401
    %v422 = vunpack.c.l.b16 %v402
    %v423 = vunpack.c.l.b16 %v403
    %v424 = vunpack.c.l.b16 %v404
    %v425 = vpack.c.b16 %v418, %v417
    %v426 = vpack.c.b16 %v420, %v419
    %v427 = vpack.c.b16 %v422, %v421
    %v428 = vpack.c.b16 %v424, %v423
    %v434 = vsel %vm194, %v396, 0
    %436 = vmatpush.bf16.msra.mxu0 0
    %437 = vmatpush.bf16.msra.mxu0 0
    %438 = vmatpush.bf16.msra.mxu0 0
    %439 = vmatpush.bf16.msra.mxu0 0
    %440 = vmatpush.bf16.msra.mxu0 %v428
    %441 = vmatpush.bf16.msra.mxu0 %v427
    %442 = vmatpush.bf16.msra.mxu0 %v426
    %443 = vmatpush.bf16.msra.mxu0 %v425
    %444 = vmatmul.bf16.gmra.mxu0 %v434
    %v445 = vpop.f32.mrf.mxu0
    %v446 = vadd.f32 %v407, %v445
    %v447 = vpop.f32.mrf.mxu0
    %448 = vdwg.mxu0
    %v449 = vmax.f32 %v446, 0.0
    %v450 = vpack.c.bf16 %v449, %v449
    %v451 = vld [vmem:[%s9] sm:$0xf]
    %v452 = vld [vmem:[%s9 + $0x4] sm:$0xf]
    %v453 = vld [vmem:[%s9 + $0x8] sm:$0xf]
    %v454 = vld [vmem:[%s9 + $0xc] sm:$0xf]
    %v455 = vld [vmem:[%s9 + $0x10] sm:$0xf]
    %v456 = vld [vmem:[%s9 + $0x14] sm:$0xf]
    %v457 = vld [vmem:[%s9 + $0x18] sm:$0xf]
    %v458 = vld [vmem:[%s9 + $0x1c] sm:$0xf]
    %v459 = vld [vmem:[%s10] sm:$0x1]
    %v461 = vperm.slane %v459, 0
    %v471 = vunpack.c.l.b16 %v451
    %v472 = vunpack.c.l.b16 %v452
    %v473 = vunpack.c.l.b16 %v453
    %v474 = vunpack.c.l.b16 %v454
    %v475 = vunpack.c.l.b16 %v455
    %v476 = vunpack.c.l.b16 %v456
    %v477 = vunpack.c.l.b16 %v457
    %v478 = vunpack.c.l.b16 %v458
    %v479 = vpack.c.b16 %v472, %v471
    %v480 = vpack.c.b16 %v474, %v473
    %v481 = vpack.c.b16 %v476, %v475
    %v482 = vpack.c.b16 %v478, %v477
    %v488 = vsel %vm194, %v450, 0
    %490 = vmatpush.bf16.msra.mxu0 0
    %491 = vmatpush.bf16.msra.mxu0 0
    %492 = vmatpush.bf16.msra.mxu0 0
    %493 = vmatpush.bf16.msra.mxu0 0
    %494 = vmatpush.bf16.msra.mxu0 %v482
    %495 = vmatpush.bf16.msra.mxu0 %v481
    %496 = vmatpush.bf16.msra.mxu0 %v480
    %497 = vmatpush.bf16.msra.mxu0 %v479
    %498 = vmatmul.bf16.gmra.mxu0 %v488
    %v499 = vpop.f32.mrf.mxu0
    %v500 = vadd.f32 %v461, %v499
    %v501 = vpop.f32.mrf.mxu0
    %502 = vdwg.mxu0
    %vm503 = vcmask 31744
    %504 = vst.msk [vmem:[%s11] sm:$0xff] %vm503, %v500
    // Predicated region
    $region58: #{agent_nn_forward.1} parent=1 // pred_check
      _
    $region59: #{agent_nn_forward.1} parent=1 // pred_check_branch
      %506 = sbr.rel (0) target = $region61
    $region60: #{agent_nn_forward.1} parent=1 // pred_region
      _
    $region61: #{agent_nn_forward.1} parent=1 // pred_fallthru
      _
    // Predicated region
    $region62: #{agent_nn_forward.1} parent=1 // pred_check
      _
    $region63: #{agent_nn_forward.1} parent=1 // pred_check_branch
      %508 = sbr.rel (0) target = $region65
    $region64: #{agent_nn_forward.1} parent=1 // pred_region
      _
    $region65: #{agent_nn_forward.1} parent=1 // pred_fallthru
      _
    // Predicated region
    $region66: #{agent_nn_forward.1} parent=1 // pred_check
      _
    $region67: #{agent_nn_forward.1} parent=1 // pred_check_branch
      %510 = sbr.rel (0) target = $region69
    $region68: #{agent_nn_forward.1} parent=1 // pred_region
      _
    $region69: #{agent_nn_forward.1} parent=1 // pred_fallthru
      _
    // Predicated region
    $region70: #{agent_nn_forward.1} parent=1 // pred_check
      _
    $region71: #{agent_nn_forward.1} parent=1 // pred_check_branch
      %512 = sbr.rel (0) target = $region73
    $region72: #{agent_nn_forward.1} parent=1 // pred_region
      _
    $region73: #{agent_nn_forward.1} parent=1 // pred_fallthru
      _
    %513 = vsyncpa [#allocation3], 1
    %514 = vsyncpa [#allocation5], 1

</llo_original>
